<compile_context>
chip_gen: v5e
topology: v5e:2x2
jax: 0.10.0
libtpu: 0.0.40
codegen_flags: <defaults>
</compile_context>

<pallas_src>
import numpy as np
import jax
import jax.numpy as jnp
from jax.experimental import pallas as pl
from jax.experimental.pallas import tpu as pltpu

# ---- config (small, consistent with the module's __init__) ----
VOCAB = 50
EMB_DIM = 32
SEQ_LEN = 16
BATCH = 2
NUM_FILTERS = 8
FILTER_SIZES = (2, 3, 4)
CLASS_NUM = 4
TOTAL_FILTERS = NUM_FILTERS * len(FILTER_SIZES)   # 24
KMAX = max(FILTER_SIZES)                          # 4
L_PAD = 16                                        # conv positions padded to a sublane multiple
ROWS = BATCH * L_PAD                              # 32 fused rows (batch x padded positions)
V_PAD = 64                                        # per-tap vocab padded 50 -> 64
OH_COLS = KMAX * V_PAD                            # 256 = 2 x 128 lanes (matmul K dim)
OUT_LANES = 128                                   # lane-dense filter / logit width
PAD_ID = V_PAD - 1                                # 63: pad token -> zero rows of the folded weight
NEG = np.float32(-1e30)

# post-pool bias/ReLU rewrite requires at least one valid position per filter size
assert SEQ_LEN >= KMAX

# ---- packed parameter slab layout (rows x 128 lanes, f32, all offsets 8-aligned) ----
W_COMB_OFF = 0                        # (256, 128) embedding-folded fused conv weight
MASK_OFF = W_COMB_OFF + OH_COLS       # 256: (32, 128) additive validity mask, row = b*L_PAD + t
CBIAS_OFF = MASK_OFF + ROWS           # 288: row 288 holds the concatenated conv biases
WF_OFF = CBIAS_OFF + 8                # 296: (128, 128) classifier weight (rows>=24, cols>=4 zero)
BF_OFF = WF_OFF + OUT_LANES           # 424: row 424 holds the classifier bias
SLAB_ROWS = BF_OFF + 8                # 432


def _textcnn_kernel(seq_ref, slab_ref, out_ref):
    # seq_ref  : (SEQ_LEN, BATCH) int32  — sequence along sublanes, batch along lanes
    # slab_ref : (SLAB_ROWS, 128) f32    — packed parameters (see layout above)
    # out_ref  : (BATCH, 128) f32        — lane-dense logits slab
    seq = seq_ref[...]                                                   # (16, 2) int32
    pad_tail = jnp.full((KMAX - 1, BATCH), PAD_ID, jnp.int32)            # pad ids -> zero weight rows
    seq_pad = jnp.concatenate([seq, pad_tail], axis=0)                   # (19, 2)

    v_iota = jax.lax.broadcasted_iota(jnp.int32, (L_PAD, V_PAD), 1)      # (16, 64)

    # one-hot (32, 256): row r = b*L_PAD + t, col c = j*V_PAD + v, 1 iff seq_pad[t+j, b] == v
    per_batch = []
    for b in range(BATCH):                                               # static, 2 iters
        taps = []
        for j in range(KMAX):                                            # static, 4 iters
            col = seq_pad[j:j + L_PAD, b:b + 1]                          # (16, 1)
            taps.append((col == v_iota).astype(jnp.float32))             # (16, 64)
        per_batch.append(jnp.concatenate(taps, axis=1))                  # (16, 256)
    onehot = jnp.concatenate(per_batch, axis=0)                          # (32, 256)

    # embedding gather + im2col + all three conv sizes as ONE MXU matmul (K = 256)
    w_comb = slab_ref[pl.ds(W_COMB_OFF, OH_COLS), :]                     # (256, 128)
    conv = jnp.dot(onehot, w_comb, preferred_element_type=jnp.float32)   # (32, 128)
    conv = conv + slab_ref[pl.ds(MASK_OFF, ROWS), :]                     # mask invalid positions

    # per-batch global max-pool: sublane-aligned reshape + one reduction
    pooled = jnp.max(conv.reshape(BATCH, L_PAD, OUT_LANES), axis=1)      # (2, 128)

    # bias + ReLU after the pool (equivalent to PyTorch's relu-then-pool)
    feat = jnp.maximum(pooled + slab_ref[pl.ds(CBIAS_OFF, 1), :], 0.0)   # (2, 128)

    # classifier, lane-dense output (dropout is identity in eval mode)
    wf = slab_ref[pl.ds(WF_OFF, OUT_LANES), :]                           # (128, 128)
    out_ref[...] = (jnp.dot(feat, wf, preferred_element_type=jnp.float32)
                    + slab_ref[pl.ds(BF_OFF, 1), :])


def prepare_params(emb_table, conv_ws_torch, conv_bs, wf_torch, bf):
    """One-time host-side folding of ALL parameters into a single (SLAB_ROWS, 128) f32 slab."""
    emb = np.asarray(emb_table, np.float64)

    # fused conv weight (KMAX, D, 128): taps j >= k zero for filter group k, cols >= 24 zero
    w_fused = np.zeros((KMAX, EMB_DIM, OUT_LANES), np.float64)
    for g, (k, w) in enumerate(zip(FILTER_SIZES, conv_ws_torch)):
        wk = np.transpose(np.asarray(w, np.float64)[:, 0, :, :], (1, 2, 0))   # (k, D, NF)
        w_fused[:k, :, g * NUM_FILTERS:(g + 1) * NUM_FILTERS] = wk

    # fold the embedding lookup into the conv: w_comb[j*V_PAD + v, f] = E[v, :] . w_fused[j, :, f]
    w_comb = np.zeros((KMAX, V_PAD, OUT_LANES), np.float32)
    w_comb[:, :VOCAB, :] = np.einsum('vd,jdf->jvf', emb, w_fused).astype(np.float32)
    w_comb = w_comb.reshape(OH_COLS, OUT_LANES)

    # additive validity mask over (ROWS, 128); row = b * L_PAD + t
    m = np.zeros((L_PAD, OUT_LANES), np.float32)
    t = np.arange(L_PAD)
    for g, k in enumerate(FILTER_SIZES):
        m[t > (SEQ_LEN - k), g * NUM_FILTERS:(g + 1) * NUM_FILTERS] = NEG
    mask = np.tile(m, (BATCH, 1))

    conv_bias = np.concatenate([np.asarray(b_, np.float32) for b_ in conv_bs], axis=1)  # (1, 24)
    wf = np.asarray(wf_torch, np.float32)                                # (CLASS_NUM, 24)
    bf_ = np.asarray(bf, np.float32)                                     # (1, CLASS_NUM)

    slab = np.zeros((SLAB_ROWS, OUT_LANES), np.float32)
    slab[W_COMB_OFF:W_COMB_OFF + OH_COLS] = w_comb
    slab[MASK_OFF:MASK_OFF + ROWS] = mask
    slab[CBIAS_OFF, :TOTAL_FILTERS] = conv_bias[0]
    slab[WF_OFF:WF_OFF + TOTAL_FILTERS, :CLASS_NUM] = wf.T
    slab[BF_OFF, :CLASS_NUM] = bf_[0]
    return jnp.asarray(slab)


@jax.jit
def textcnn_forward(seq, slab):
    """seq: (SEQ_LEN, BATCH) int32 token ids (the PyTorch forward does seq.t() internally)."""
    out = pl.pallas_call(
        _textcnn_kernel,
        out_shape=jax.ShapeDtypeStruct((BATCH, OUT_LANES), jnp.float32),
        in_specs=[
            pl.BlockSpec(memory_space=pltpu.MemorySpace.VMEM),   # seq, whole array
            pl.BlockSpec(memory_space=pltpu.MemorySpace.VMEM),   # packed parameter slab
        ],
        out_specs=pl.BlockSpec(memory_space=pltpu.MemorySpace.VMEM),
    )(seq.astype(jnp.int32), slab)
    return out[:, :CLASS_NUM]                                            # (B, CLASS_NUM)


def reference_forward(seq, emb_table, conv_ws_torch, conv_bs, wf_torch, bf):
    """Pure-JAX reference mirroring the PyTorch forward (eval mode)."""
    x = emb_table[seq.T]                                                  # (B, S, D)
    feats = []
    for k, w, b in zip(FILTER_SIZES, conv_ws_torch, conv_bs):
        L = SEQ_LEN - k + 1
        w2 = w.reshape(NUM_FILTERS, -1)                                   # (NF, k*D)
        outs = []
        for t in range(L):
            window = x[:, t:t + k, :].reshape(BATCH, -1)                  # (B, k*D)
            outs.append(window @ w2.T + b[0])                             # (B, NF)
        conv_out = jnp.stack(outs, axis=2)                                # (B, NF, L)
        conv_out = jnp.maximum(conv_out, 0.0)
        feats.append(jnp.max(conv_out, axis=2))                           # (B, NF)
    feat = jnp.concatenate(feats, axis=1)                                 # (B, TOTAL)
    return feat @ wf_torch.T + bf[0]


if __name__ == "__main__":
    key = jax.random.PRNGKey(0)
    keys = jax.random.split(key, 4 + 2 * len(FILTER_SIZES))

    # deterministic synthetic parameters (shapes from the module's __init__)
    emb_table = jax.random.normal(keys[0], (VOCAB, EMB_DIM), jnp.float32) * 0.1
    conv_ws_torch = []   # PyTorch layout: (NF, 1, k, D)
    conv_bs = []         # (1, NF)
    for i, k in enumerate(FILTER_SIZES):
        conv_ws_torch.append(
            jax.random.normal(keys[1 + 2 * i], (NUM_FILTERS, 1, k, EMB_DIM), jnp.float32) * 0.1)
        conv_bs.append(
            jax.random.normal(keys[2 + 2 * i], (1, NUM_FILTERS), jnp.float32) * 0.1)
    wf_torch = jax.random.normal(keys[-2], (CLASS_NUM, TOTAL_FILTERS), jnp.float32) * 0.1
    bf = jax.random.normal(keys[-1], (1, CLASS_NUM), jnp.float32) * 0.1

    # one-time kernel-friendly parameter folding into a single lane-dense slab
    slab = prepare_params(emb_table, conv_ws_torch, conv_bs, wf_torch, bf)

    # deterministic input: (SEQ_LEN, BATCH) token ids, as the PyTorch forward expects
    seq = jax.random.randint(jax.random.PRNGKey(1), (SEQ_LEN, BATCH), 0, VOCAB, jnp.int32)

    out = jax.block_until_ready(textcnn_forward(seq, slab))

    ref = reference_forward(seq, emb_table, conv_ws_torch, conv_bs, wf_torch, bf)
    assert out.shape == (BATCH, CLASS_NUM)
    assert jnp.allclose(out, ref, atol=1e-4, rtol=1e-4), (out, ref)

    # TODO(synk): the PyTorch forward also computes `xx = conv_and_pool(..., self.conv)` but never
    # uses it in the output; it is intentionally not reproduced.
    print("KERNEL_OK")
</pallas_src>

<mosaic_0001>
module attributes {stable_mosaic.version = 11 : i64} {
  func.func @_textcnn_kernel(%arg0: memref<16x2xi32, #tpu.memory_space<vmem>>, %arg1: memref<432x128xf32, #tpu.memory_space<vmem>>, %arg2: memref<2x128xf32, #tpu.memory_space<vmem>>) attributes {dimension_semantics = [], scalar_prefetch = 0 : i64, scratch_operands = 0 : i64, tpu.core_type = #tpu.core_type<tc>} {
    %c0 = arith.constant 0 : index
    %c0_0 = arith.constant 0 : index
    %0 = vector.load %arg0[%c0, %c0_0] : memref<16x2xi32, #tpu.memory_space<vmem>>, vector<16x2xi32>
    %c63_i32 = arith.constant 63 : i32
    %1 = vector.broadcast %c63_i32 : i32 to vector<3x2xi32>
    %2 = tpu.concatenate %0, %1 in 0 : vector<16x2xi32>, vector<3x2xi32> -> vector<19x2xi32>
    %3 = tpu.iota {dimensions = array<i32: 1>} : vector<16x64xi32>
    %4 = vector.extract_strided_slice %2 {offsets = [0, 0], sizes = [16, 1], strides = [1, 1]} : vector<19x2xi32> to vector<16x1xi32>
    %5 = vector.broadcast %4 : vector<16x1xi32> to vector<16x64xi32>
    %6 = arith.cmpi eq, %5, %3 : vector<16x64xi32>
    %7 = arith.extui %6 : vector<16x64xi1> to vector<16x64xi32>
    %8 = arith.sitofp %7 : vector<16x64xi32> to vector<16x64xf32>
    %9 = vector.extract_strided_slice %2 {offsets = [1, 0], sizes = [16, 1], strides = [1, 1]} : vector<19x2xi32> to vector<16x1xi32>
    %10 = vector.broadcast %9 : vector<16x1xi32> to vector<16x64xi32>
    %11 = arith.cmpi eq, %10, %3 : vector<16x64xi32>
    %12 = arith.extui %11 : vector<16x64xi1> to vector<16x64xi32>
    %13 = arith.sitofp %12 : vector<16x64xi32> to vector<16x64xf32>
    %14 = vector.extract_strided_slice %2 {offsets = [2, 0], sizes = [16, 1], strides = [1, 1]} : vector<19x2xi32> to vector<16x1xi32>
    %15 = vector.broadcast %14 : vector<16x1xi32> to vector<16x64xi32>
    %16 = arith.cmpi eq, %15, %3 : vector<16x64xi32>
    %17 = arith.extui %16 : vector<16x64xi1> to vector<16x64xi32>
    %18 = arith.sitofp %17 : vector<16x64xi32> to vector<16x64xf32>
    %19 = vector.extract_strided_slice %2 {offsets = [3, 0], sizes = [16, 1], strides = [1, 1]} : vector<19x2xi32> to vector<16x1xi32>
    %20 = vector.broadcast %19 : vector<16x1xi32> to vector<16x64xi32>
    %21 = arith.cmpi eq, %20, %3 : vector<16x64xi32>
    %22 = arith.extui %21 : vector<16x64xi1> to vector<16x64xi32>
    %23 = arith.sitofp %22 : vector<16x64xi32> to vector<16x64xf32>
    %24 = tpu.concatenate %8, %13, %18, %23 in 1 : vector<16x64xf32>, vector<16x64xf32>, vector<16x64xf32>, vector<16x64xf32> -> vector<16x256xf32>
    %25 = vector.extract_strided_slice %2 {offsets = [0, 1], sizes = [16, 1], strides = [1, 1]} : vector<19x2xi32> to vector<16x1xi32>
    %26 = vector.broadcast %25 : vector<16x1xi32> to vector<16x64xi32>
    %27 = arith.cmpi eq, %26, %3 : vector<16x64xi32>
    %28 = arith.extui %27 : vector<16x64xi1> to vector<16x64xi32>
    %29 = arith.sitofp %28 : vector<16x64xi32> to vector<16x64xf32>
    %30 = vector.extract_strided_slice %2 {offsets = [1, 1], sizes = [16, 1], strides = [1, 1]} : vector<19x2xi32> to vector<16x1xi32>
    %31 = vector.broadcast %30 : vector<16x1xi32> to vector<16x64xi32>
    %32 = arith.cmpi eq, %31, %3 : vector<16x64xi32>
    %33 = arith.extui %32 : vector<16x64xi1> to vector<16x64xi32>
    %34 = arith.sitofp %33 : vector<16x64xi32> to vector<16x64xf32>
    %35 = vector.extract_strided_slice %2 {offsets = [2, 1], sizes = [16, 1], strides = [1, 1]} : vector<19x2xi32> to vector<16x1xi32>
    %36 = vector.broadcast %35 : vector<16x1xi32> to vector<16x64xi32>
    %37 = arith.cmpi eq, %36, %3 : vector<16x64xi32>
    %38 = arith.extui %37 : vector<16x64xi1> to vector<16x64xi32>
    %39 = arith.sitofp %38 : vector<16x64xi32> to vector<16x64xf32>
    %40 = vector.extract_strided_slice %2 {offsets = [3, 1], sizes = [16, 1], strides = [1, 1]} : vector<19x2xi32> to vector<16x1xi32>
    %41 = vector.broadcast %40 : vector<16x1xi32> to vector<16x64xi32>
    %42 = arith.cmpi eq, %41, %3 : vector<16x64xi32>
    %43 = arith.extui %42 : vector<16x64xi1> to vector<16x64xi32>
    %44 = arith.sitofp %43 : vector<16x64xi32> to vector<16x64xf32>
    %45 = tpu.concatenate %29, %34, %39, %44 in 1 : vector<16x64xf32>, vector<16x64xf32>, vector<16x64xf32>, vector<16x64xf32> -> vector<16x256xf32>
    %46 = tpu.concatenate %24, %45 in 0 : vector<16x256xf32>, vector<16x256xf32> -> vector<32x256xf32>
    %c0_1 = arith.constant 0 : index
    %c0_2 = arith.constant 0 : index
    %47 = vector.load %arg1[%c0_1, %c0_2] : memref<432x128xf32, #tpu.memory_space<vmem>>, vector<256x128xf32>
    %cst = arith.constant dense<0.000000e+00> : vector<32x128xf32>
    %48 = tpu.matmul %46, %47, %cst {dimension_numbers = #tpu.dot_dimension_numbers<[1], [0], [0], [1], [0, 0, 1, 1], [], []>} : vector<32x256xf32>, vector<256x128xf32>, vector<32x128xf32> -> vector<32x128xf32>
    %c256 = arith.constant 256 : index
    %c0_3 = arith.constant 0 : index
    %49 = vector.load %arg1[%c256, %c0_3] : memref<432x128xf32, #tpu.memory_space<vmem>>, vector<32x128xf32>
    %50 = arith.addf %48, %49 : vector<32x128xf32>
    %51 = vector.shape_cast %50 : vector<32x128xf32> to vector<2x16x128xf32>
    %cst_4 = arith.constant dense<0xFF800000> : vector<2x128xf32>
    %52 = vector.multi_reduction <maximumf>, %51, %cst_4 [1] : vector<2x16x128xf32> to vector<2x128xf32>
    %c288 = arith.constant 288 : index
    %c0_5 = arith.constant 0 : index
    %53 = vector.load %arg1[%c288, %c0_5] : memref<432x128xf32, #tpu.memory_space<vmem>>, vector<1x128xf32>
    %54 = vector.broadcast %53 : vector<1x128xf32> to vector<2x128xf32>
    %55 = arith.addf %52, %54 : vector<2x128xf32>
    %cst_6 = arith.constant 0.000000e+00 : f32
    %56 = vector.broadcast %cst_6 : f32 to vector<2x128xf32>
    %57 = arith.maximumf %55, %56 : vector<2x128xf32>
    %c296 = arith.constant 296 : index
    %c0_7 = arith.constant 0 : index
    %58 = vector.load %arg1[%c296, %c0_7] : memref<432x128xf32, #tpu.memory_space<vmem>>, vector<128x128xf32>
    %cst_8 = arith.constant dense<0.000000e+00> : vector<2x128xf32>
    %59 = tpu.matmul %57, %58, %cst_8 {dimension_numbers = #tpu.dot_dimension_numbers<[1], [0], [0], [1], [0, 0, 1, 1], [], []>} : vector<2x128xf32>, vector<128x128xf32>, vector<2x128xf32> -> vector<2x128xf32>
    %c424 = arith.constant 424 : index
    %c0_9 = arith.constant 0 : index
    %60 = vector.load %arg1[%c424, %c0_9] : memref<432x128xf32, #tpu.memory_space<vmem>>, vector<1x128xf32>
    %61 = vector.broadcast %60 : vector<1x128xf32> to vector<2x128xf32>
    %62 = arith.addf %59, %61 : vector<2x128xf32>
    %c0_10 = arith.constant 0 : index
    %c0_11 = arith.constant 0 : index
    %63 = vector.load %arg2[%c0_10, %c0_11] : memref<2x128xf32, #tpu.memory_space<vmem>>, vector<2x128xf32>
    tpu.vector_store %arg2[%c0_10, %c0_11], %62 {strides = array<i32>} : memref<2x128xf32, #tpu.memory_space<vmem>>, vector<2x128xf32>,
    return
  }
}

</mosaic_0001>

<llo_original>
// kernel: textcnn_forward.1
$region0: #{textcnn_forward.1}
  #allocation0 [shape = 'u32[]', space=smem, size = 0x4, offset = 0x4, fixed_abs, tag = 'smem constant byte address 0x4 - core index']
  #allocation1 [shape = 'u32[72,128]{1,0:T(1,128)}', space=vmem, size = 0x9000, scoped, tag = 'internal scratch']
  %s0 = inlined_call_operand.vmem [shape: s32[16,2], index: 0, kind: input, shape index: {}]
  %s1 = inlined_call_operand.hbm [shape: f32[432,128], index: 1, kind: input, shape index: {}]
  %s2 = inlined_call_operand.hbm [shape: f32[2,128], index: 2, kind: output, shape index: {}]
  %s3 = sld [smem:[#allocation0]]
  $region22: #{textcnn_forward.1} parent=0
    _
  %s5 = ssub.s32 1, %s3
  %s6 = scalar_select 0, %s5, %s3
  $region1: #{textcnn_forward.1} parent=0
    #allocation2 [shape = 'u8[221184]{0}', space=vmem, size = 0x36000, scoped, tag = 'input window, operand 1, single buffered']
    #allocation3 [shape = 's32[1]{0}', space=sflag, size = 0x4, scoped, tag = 'scoped memory for textcnn_forward.1']
    #allocation4 [shape = 's32[1]{0}', space=sflag, size = 0x4, scoped, tag = 'scoped memory for textcnn_forward.1']
    #allocation5 [shape = 'u8[1024]{0}', space=vmem, size = 0x400, scoped, tag = 'output window, operand 0, single buffered']
    %7 = vsyncpa [#allocation3], 0
    %8 = vsyncpa [#allocation4], 0
    // Predicated region
    $region2: #{textcnn_forward.1} parent=1 // pred_check
      _
    $region3: #{textcnn_forward.1} parent=1 // pred_check_branch
      %10 = sbr.rel (0) target = $region5
    $region4: #{textcnn_forward.1} parent=1 // pred_region
      _
    $region5: #{textcnn_forward.1} parent=1 // pred_fallthru
      _
    // Predicated region
    $region6: #{textcnn_forward.1} parent=1 // pred_check
      _
    $region7: #{textcnn_forward.1} parent=1 // pred_check_branch
      %12 = sbr.rel (0) target = $region9
    $region8: #{textcnn_forward.1} parent=1 // pred_region
      %14 = vsyncadd [#allocation3], 0
      %s15 = sshll.u32 %s1, 4
      %s16 = int_to_ptr.hbm [resolvable:$true] %s15
      %s17 = sshll.u32 [#allocation2], 4
      %s18 = int_to_ptr.vmem [resolvable:$true] %s17
      %23 = dma.hbm_to_vmem [thread:$0]  %s16, 6912, %s18, [#allocation3], 128, 128, 8
    $region9: #{textcnn_forward.1} parent=1 // pred_fallthru
      _
    // Predicated region
    $region10: #{textcnn_forward.1} parent=1 // pred_check
      _
    $region11: #{textcnn_forward.1} parent=1 // pred_check_branch
      %25 = sbr.rel (0) target = $region13
    $region12: #{textcnn_forward.1} parent=1 // pred_region
      %27 = dma.done [#allocation3], 6912
    $region13: #{textcnn_forward.1} parent=1 // pred_fallthru
      _
    %v28 = vld [vmem:[%s0] sm:$0xff]
    %v29 = vld [vmem:[%s0 + $0x8] sm:$0xff]
    %v30 = vlaneseq
    %v31 = vand.u32 %v30, 127
    %32 = vset.pattern.permute.xlu0 0
    %33 = vperm.xlu0 %32, %v28
    %v34 = vpop.permute.xlu0 %33
    %35 = vset.pattern.permute.xlu0 0
    %36 = vperm.xlu0 %35, %v29
    %v37 = vpop.permute.xlu0 %36
    %vm38 = vcmp.eq.s32.totalorder %v34, %v31
    %vm39 = vcmp.eq.s32.totalorder %v37, %v31
    %v40 = vsel %vm38, 1, 0
    %v41 = vsel %vm39, 1, 0
    %v42 = vcvt.s32.f32 %v40
    %v43 = vcvt.s32.f32 %v41
    %44 = vset.pattern.permute.xlu0 0
    %45 = vperm.xlu0 %44, 63
    %v46 = vpop.permute.xlu0 %45
    %vm47 = vcmp.eq.s32.totalorder %v46, %v31
    %v48 = vsel %vm47, 1, 0
    %v49 = vcvt.s32.f32 %v48
    %vm53 = vcmask 1046528
    %v54 = vrot.slane %v42, 1
    %v55 = vrot.slane %v43, 1
    %v56 = vsel %vm53, %v54, %v55
    %v57 = vrot.slane %v49, 1
    %v58 = vsel %vm53, %v55, %v57
    %59 = vrot.lane.b32.xlu0 %v56, 64
    %v60 = vpop.permute.xlu0 %59
    %61 = vrot.lane.b32.xlu0 %v58, 64
    %v62 = vpop.permute.xlu0 %61
    %vm65 = vcmask 1045504
    %v66 = vrot.slane %v42, 2
    %v67 = vrot.slane %v43, 2
    %v68 = vsel %vm65, %v66, %v67
    %v69 = vrot.slane %v49, 2
    %v70 = vsel %vm65, %v67, %v69
    %vm73 = vcmask 1044480
    %v74 = vrot.slane %v42, 3
    %v75 = vrot.slane %v43, 3
    %v76 = vsel %vm73, %v74, %v75
    %v77 = vrot.slane %v49, 3
    %v78 = vsel %vm73, %v75, %v77
    %79 = vrot.lane.b32.xlu0 %v76, 64
    %v80 = vpop.permute.xlu0 %79
    %81 = vrot.lane.b32.xlu0 %v78, 64
    %v82 = vpop.permute.xlu0 %81
    %vm85 = vcmask 523264
    %v86 = vsel %vm85, %v42, %v60
    %v87 = vsel %vm85, %v43, %v62
    %v88 = vsel %vm85, %v68, %v80
    %v89 = vsel %vm85, %v70, %v82
    %90 = vset.pattern.permute.xlu0 1
    %91 = vperm.xlu0 %90, %v28
    %v92 = vpop.permute.xlu0 %91
    %93 = vset.pattern.permute.xlu0 1
    %94 = vperm.xlu0 %93, %v29
    %v95 = vpop.permute.xlu0 %94
    %vm96 = vcmp.eq.s32.totalorder %v92, %v31
    %vm97 = vcmp.eq.s32.totalorder %v95, %v31
    %v98 = vsel %vm96, 1, 0
    %v99 = vsel %vm97, 1, 0
    %v100 = vcvt.s32.f32 %v98
    %v101 = vcvt.s32.f32 %v99
    %102 = vset.pattern.permute.xlu0 1
    %103 = vperm.xlu0 %102, 63
    %v104 = vpop.permute.xlu0 %103
    %vm105 = vcmp.eq.s32.totalorder %v104, %v31
    %v106 = vsel %vm105, 1, 0
    %v107 = vcvt.s32.f32 %v106
    %v111 = vrot.slane %v100, 1
    %v112 = vrot.slane %v101, 1
    %v113 = vsel %vm53, %v111, %v112
    %v114 = vrot.slane %v107, 1
    %v115 = vsel %vm53, %v112, %v114
    %116 = vrot.lane.b32.xlu0 %v113, 64
    %v117 = vpop.permute.xlu0 %116
    %118 = vrot.lane.b32.xlu0 %v115, 64
    %v119 = vpop.permute.xlu0 %118
    %v122 = vrot.slane %v100, 2
    %v123 = vrot.slane %v101, 2
    %v124 = vsel %vm65, %v122, %v123
    %v125 = vrot.slane %v107, 2
    %v126 = vsel %vm65, %v123, %v125
    %v129 = vrot.slane %v100, 3
    %v130 = vrot.slane %v101, 3
    %v131 = vsel %vm73, %v129, %v130
    %v132 = vrot.slane %v107, 3
    %v133 = vsel %vm73, %v130, %v132
    %134 = vrot.lane.b32.xlu0 %v131, 64
    %v135 = vpop.permute.xlu0 %134
    %136 = vrot.lane.b32.xlu0 %v133, 64
    %v137 = vpop.permute.xlu0 %136
    %v140 = vsel %vm85, %v100, %v117
    %v141 = vsel %vm85, %v101, %v119
    %v142 = vsel %vm85, %v124, %v135
    %v143 = vsel %vm85, %v126, %v137
    %v144 = vld [vmem:[#allocation2] sm:$0xff]
    %v145 = vld [vmem:[#allocation2 + $0x8] sm:$0xff]
    %v146 = vld [vmem:[#allocation2 + $0x10] sm:$0xff]
    %v147 = vld [vmem:[#allocation2 + $0x18] sm:$0xff]
    %v148 = vld [vmem:[#allocation2 + $0x20] sm:$0xff]
    %v149 = vld [vmem:[#allocation2 + $0x28] sm:$0xff]
    %v150 = vld [vmem:[#allocation2 + $0x30] sm:$0xff]
    %v151 = vld [vmem:[#allocation2 + $0x38] sm:$0xff]
    %v152 = vld [vmem:[#allocation2 + $0x40] sm:$0xff]
    %v153 = vld [vmem:[#allocation2 + $0x48] sm:$0xff]
    %v154 = vld [vmem:[#allocation2 + $0x50] sm:$0xff]
    %v155 = vld [vmem:[#allocation2 + $0x58] sm:$0xff]
    %v156 = vld [vmem:[#allocation2 + $0x60] sm:$0xff]
    %v157 = vld [vmem:[#allocation2 + $0x68] sm:$0xff]
    %v158 = vld [vmem:[#allocation2 + $0x70] sm:$0xff]
    %v159 = vld [vmem:[#allocation2 + $0x78] sm:$0xff]
    %v160 = vld [vmem:[#allocation2 + $0x80] sm:$0xff]
    %v161 = vld [vmem:[#allocation2 + $0x88] sm:$0xff]
    %v162 = vld [vmem:[#allocation2 + $0x90] sm:$0xff]
    %v163 = vld [vmem:[#allocation2 + $0x98] sm:$0xff]
    %v164 = vld [vmem:[#allocation2 + $0xa0] sm:$0xff]
    %v165 = vld [vmem:[#allocation2 + $0xa8] sm:$0xff]
    %v166 = vld [vmem:[#allocation2 + $0xb0] sm:$0xff]
    %v167 = vld [vmem:[#allocation2 + $0xb8] sm:$0xff]
    %v168 = vld [vmem:[#allocation2 + $0xc0] sm:$0xff]
    %v169 = vld [vmem:[#allocation2 + $0xc8] sm:$0xff]
    %v170 = vld [vmem:[#allocation2 + $0xd0] sm:$0xff]
    %v171 = vld [vmem:[#allocation2 + $0xd8] sm:$0xff]
    %v172 = vld [vmem:[#allocation2 + $0xe0] sm:$0xff]
    %v173 = vld [vmem:[#allocation2 + $0xe8] sm:$0xff]
    %v174 = vld [vmem:[#allocation2 + $0xf0] sm:$0xff]
    %v175 = vld [vmem:[#allocation2 + $0xf8] sm:$0xff]
    %v176 = vld [vmem:[#allocation2 + $0x100] sm:$0xff]
    %v177 = vld [vmem:[#allocation2 + $0x108] sm:$0xff]
    %v178 = vld [vmem:[#allocation2 + $0x110] sm:$0xff]
    %v179 = vld [vmem:[#allocation2 + $0x118] sm:$0xff]
    %180 = vmatpush.msra.mxu0 %v159
    %181 = vmatpush.msra.mxu0 %v158
    %182 = vmatpush.msra.mxu0 %v157
    %183 = vmatpush.msra.mxu0 %v156
    %184 = vmatpush.msra.mxu0 %v155
    %185 = vmatpush.msra.mxu0 %v154
    %186 = vmatpush.msra.mxu0 %v153
    %187 = vmatpush.msra.mxu0 %v152
    %188 = vmatpush.msra.mxu0 %v151
    %189 = vmatpush.msra.mxu0 %v150
    %190 = vmatpush.msra.mxu0 %v149
    %191 = vmatpush.msra.mxu0 %v148
    %192 = vmatpush.msra.mxu0 %v147
    %193 = vmatpush.msra.mxu0 %v146
    %194 = vmatpush.msra.mxu0 %v145
    %195 = vmatpush.msra.mxu0 %v144
    %196 = vmatmul.f32.gmra.mxu0 %v86
    %v197 = vpop.f32.mrf.mxu0
    %v198 = vadd.f32 %v176, %v197
    %199 = vmatmul.f32.gmra.mxu0 %v87
    %v200 = vpop.f32.mrf.mxu0
    %v201 = vadd.f32 %v177, %v200
    %202 = vmatmul.f32.gmra.mxu0 %v140
    %v203 = vpop.f32.mrf.mxu0
    %v204 = vadd.f32 %v178, %v203
    %205 = vmatmul.f32.gmra.mxu0 %v141
    %v206 = vpop.f32.mrf.mxu0
    %v207 = vadd.f32 %v179, %v206
    %208 = vdwg.mxu0
    %209 = vmatpush.msra.mxu0 %v175
    %210 = vmatpush.msra.mxu0 %v174
    %211 = vmatpush.msra.mxu0 %v173
    %212 = vmatpush.msra.mxu0 %v172
    %213 = vmatpush.msra.mxu0 %v171
    %214 = vmatpush.msra.mxu0 %v170
    %215 = vmatpush.msra.mxu0 %v169
    %216 = vmatpush.msra.mxu0 %v168
    %217 = vmatpush.msra.mxu0 %v167
    %218 = vmatpush.msra.mxu0 %v166
    %219 = vmatpush.msra.mxu0 %v165
    %220 = vmatpush.msra.mxu0 %v164
    %221 = vmatpush.msra.mxu0 %v163
    %222 = vmatpush.msra.mxu0 %v162
    %223 = vmatpush.msra.mxu0 %v161
    %224 = vmatpush.msra.mxu0 %v160
    %225 = vmatmul.f32.gmra.mxu0 %v88
    %v226 = vpop.f32.mrf.mxu0
    %v227 = vadd.f32 %v198, %v226
    %228 = vmatmul.f32.gmra.mxu0 %v89
    %v229 = vpop.f32.mrf.mxu0
    %v230 = vadd.f32 %v201, %v229
    %231 = vmatmul.f32.gmra.mxu0 %v142
    %v232 = vpop.f32.mrf.mxu0
    %v233 = vadd.f32 %v204, %v232
    %234 = vmatmul.f32.gmra.mxu0 %v143
    %v235 = vpop.f32.mrf.mxu0
    %v236 = vadd.f32 %v207, %v235
    %237 = vdwg.mxu0
    %v238 = vmax.f32 %v227, %v230
    %v239 = vrot.slane %v238, 4
    %v240 = vmax.f32 %v238, %v239
    %v241 = vrot.slane %v240, 2
    %v242 = vmax.f32 %v240, %v241
    %v243 = vrot.slane %v242, 1
    %v244 = vmax.f32 %v242, %v243
    %v245 = vmax.f32 %v233, %v236
    %v246 = vrot.slane %v245, 4
    %v247 = vmax.f32 %v245, %v246
    %v248 = vrot.slane %v247, 2
    %v249 = vmax.f32 %v247, %v248
    %v250 = vrot.slane %v249, 1
    %v251 = vmax.f32 %v249, %v250
    %v252 = vld [vmem:[#allocation2 + $0x120] sm:$0x1]
    %v253 = vperm.slane %v252, 0
    %v254 = vadd.f32 %v244, %v253
    %v255 = vadd.f32 %v251, %v253
    %v256 = vmax.f32 %v254, 0.0
    %v257 = vmax.f32 %v255, 0.0
    %v258 = vld [vmem:[#allocation2 + $0x128] sm:$0xff]
    %v259 = vld [vmem:[#allocation2 + $0x130] sm:$0xff]
    %v260 = vld [vmem:[#allocation2 + $0x138] sm:$0xff]
    %v261 = vld [vmem:[#allocation2 + $0x140] sm:$0xff]
    %v262 = vld [vmem:[#allocation2 + $0x148] sm:$0xff]
    %v263 = vld [vmem:[#allocation2 + $0x150] sm:$0xff]
    %v264 = vld [vmem:[#allocation2 + $0x158] sm:$0xff]
    %v265 = vld [vmem:[#allocation2 + $0x160] sm:$0xff]
    %v266 = vld [vmem:[#allocation2 + $0x168] sm:$0xff]
    %v267 = vld [vmem:[#allocation2 + $0x170] sm:$0xff]
    %v268 = vld [vmem:[#allocation2 + $0x178] sm:$0xff]
    %v269 = vld [vmem:[#allocation2 + $0x180] sm:$0xff]
    %v270 = vld [vmem:[#allocation2 + $0x188] sm:$0xff]
    %v271 = vld [vmem:[#allocation2 + $0x190] sm:$0xff]
    %v272 = vld [vmem:[#allocation2 + $0x198] sm:$0xff]
    %v273 = vld [vmem:[#allocation2 + $0x1a0] sm:$0xff]
    %v274 = vld [vmem:[#allocation2 + $0x1a8] sm:$0x1]
    %v275 = vperm.slane %v274, 0
    %v278 = vrot.slane %v257, 7
    %vm279 = vcmask 1041409
    %v280 = vsel %vm279, %v278, %v256
    %282 = vmatpush.msra.mxu0 %v273
    %283 = vmatpush.msra.mxu0 %v272
    %284 = vmatpush.msra.mxu0 %v271
    %285 = vmatpush.msra.mxu0 %v270
    %286 = vmatpush.msra.mxu0 %v269
    %287 = vmatpush.msra.mxu0 %v268
    %288 = vmatpush.msra.mxu0 %v267
    %289 = vmatpush.msra.mxu0 %v266
    %290 = vmatpush.msra.mxu0 %v265
    %291 = vmatpush.msra.mxu0 %v264
    %292 = vmatpush.msra.mxu0 %v263
    %293 = vmatpush.msra.mxu0 %v262
    %294 = vmatpush.msra.mxu0 %v261
    %295 = vmatpush.msra.mxu0 %v260
    %296 = vmatpush.msra.mxu0 %v259
    %297 = vmatpush.msra.mxu0 %v258
    %298 = vmatmul.f32.gmra.mxu0 %v280
    %v299 = vpop.f32.mrf.mxu0
    %v300 = vadd.f32 %v275, %v299
    %301 = vdwg.mxu0
    %302 = vst [vmem:[#allocation5] sm:$0x3] %v300
    // Predicated region
    $region14: #{textcnn_forward.1} parent=1 // pred_check
      _
    $region15: #{textcnn_forward.1} parent=1 // pred_check_branch
      %304 = sbr.rel (0) target = $region17
    $region16: #{textcnn_forward.1} parent=1 // pred_region
      %306 = vsyncadd [#allocation4], 0
      %s308 = sshll.u32 [#allocation5], 4
      %s309 = int_to_ptr.vmem [resolvable:$true] %s308
      %s310 = sshll.u32 %s2, 4
      %s311 = int_to_ptr.hbm [resolvable:$true] %s310
      %313 = dma.vmem_to_hbm [thread:$0]  %s309, 32, %s311, [#allocation4]
    $region17: #{textcnn_forward.1} parent=1 // pred_fallthru
      _
    // Predicated region
    $region18: #{textcnn_forward.1} parent=1 // pred_check
      _
    $region19: #{textcnn_forward.1} parent=1 // pred_check_branch
      %315 = sbr.rel (0) target = $region21
    $region20: #{textcnn_forward.1} parent=1 // pred_region
      %317 = dma.done [#allocation4], 32
    $region21: #{textcnn_forward.1} parent=1 // pred_fallthru
      _
    %318 = vsyncpa [#allocation3], 1
    %319 = vsyncpa [#allocation4], 1

</llo_original>
